<compile_context>
chip_gen: v5e
topology: v5e:2x2
jax: 0.10.0
libtpu: 0.0.40
codegen_flags: <defaults>
</compile_context>

<pallas_src>
import functools
import math

import jax
import jax.numpy as jnp
import numpy as np
from jax.experimental import pallas as pl
from jax.experimental.pallas import tpu as pltpu

_LANE = 128      # vreg lane width
_SUBLANE = 8     # f32 sublane count
_VMEM = pl.BlockSpec(memory_space=pltpu.MemorySpace.VMEM)


def _round_up(x, m):
    return ((x + m - 1) // m) * m


# ----------------------------------------------------------------------------
# Fused forward kernel
# ----------------------------------------------------------------------------
def _fused_gnn_kernel(*refs, Ks, n_mlp, n_classes, apply_softmax):
    """Entire GNN forward in one kernel.

    Ref layout (inputs then output):
      s_ref                       [NP, NP]              bf16  (S / N, zero padded)
      x_ref                       [NP, F0P]             f32
      gw_ref[i], i < len(Ks)      [K_i*FinP_i, FoutP_i] bf16  (taps stacked on rows)
      (mw_ref[j], mb_ref[j])      [FinP_j, FoutP_j] bf16, [1, FoutP_j] f32
      o_ref                       [NP, CP]              f32
    """
    n_graph = len(Ks)
    s_ref, x_ref = refs[0], refs[1]
    gw_refs = refs[2:2 + n_graph]
    mlp_refs = refs[2 + n_graph:2 + n_graph + 2 * n_mlp]
    o_ref = refs[2 + n_graph + 2 * n_mlp]

    s = s_ref[...]                                    # bf16, VMEM resident
    y = x_ref[...].astype(jnp.float32)

    # GraphFilter (LSIGF) layers + ReLU.
    for li in range(n_graph):
        K = Ks[li]
        z = y.astype(jnp.bfloat16)
        taps = [z]
        for _ in range(1, K):
            # z_k = S @ z_{k-1}: bf16 operands on the MXU, f32 accumulate.
            z = jnp.dot(s, z, preferred_element_type=jnp.float32)
            z = z.astype(jnp.bfloat16)
            taps.append(z)
        zs = taps[0] if K == 1 else jnp.concatenate(taps, axis=-1)
        # Single tap contraction: [NP, K*FinP] @ [K*FinP, FoutP].
        y = jnp.dot(zs, gw_refs[li][...], preferred_element_type=jnp.float32)
        y = jnp.maximum(y, 0.0)                       # ReLU in f32 (VPU)

    # MLP (nn.Linear) layers, no activation.
    for j in range(n_mlp):
        w = mlp_refs[2 * j][...]                      # bf16
        b = mlp_refs[2 * j + 1][...]                  # f32 [1, FoutP]
        y = jnp.dot(y.astype(jnp.bfloat16), w, preferred_element_type=jnp.float32) + b

    # log_softmax(dim=1) over the real (unpadded) class columns.
    if apply_softmax:
        mask = jax.lax.broadcasted_iota(jnp.int32, y.shape, 1) < n_classes
        ym = jnp.where(mask, y, -1e30)
        m = jnp.max(ym, axis=1, keepdims=True)
        sh = ym - m
        p = jnp.where(mask, jnp.exp(sh), 0.0)         # exp on the EUP
        y = sh - jnp.log(jnp.sum(p, axis=1, keepdims=True))

    o_ref[...] = y.astype(o_ref.dtype)


# ----------------------------------------------------------------------------
# Host-side glue: parameter init, S densification, padding, fused call
# ----------------------------------------------------------------------------
def init_gnn_params(key, Flist, Klist, MLPlist):
    params = {"graph": [], "mlp": []}
    # GraphFilter layers: K weights each [Fin, Fout], uniform(-stdv, stdv),
    # stdv = 1 / sqrt(Fin * K)  (reset_parameters).
    for i in range(len(Flist) - 1):
        Fin, Fout, K = Flist[i], Flist[i + 1], Klist[i]
        stdv = 1.0 / math.sqrt(Fin * K)
        key, sub = jax.random.split(key)
        W = jax.random.uniform(sub, (K, Fin, Fout), jnp.float32, -stdv, stdv)
        params["graph"].append(W)
    # nn.Linear: weight/bias uniform(-1/sqrt(in), 1/sqrt(in)).
    for i in range(len(MLPlist) - 1):
        Fin, Fout = MLPlist[i], MLPlist[i + 1]
        bound = 1.0 / math.sqrt(Fin)
        key, kw, kb = jax.random.split(key, 3)
        W = jax.random.uniform(kw, (Fin, Fout), jnp.float32, -bound, bound)
        b = jax.random.uniform(kb, (1, Fout), jnp.float32, -bound, bound)
        params["mlp"].append((W, b))
    return params


def build_shift_operator(edge_index, edge_weight, N, normalize=True):
    """Densify sparse_coo_tensor(edge_index, edge_weight, (N,N)) (plain-JAX glue)."""
    S = jnp.zeros((N, N), jnp.float32)
    S = S.at[edge_index[0], edge_index[1]].add(edge_weight)
    if normalize:
        S = S / N
    return S


def _pad2(a, rows, cols):
    return jnp.pad(a, ((0, rows - a.shape[0]), (0, cols - a.shape[1])))


@functools.partial(jax.jit, static_argnames=("softmax",))
def gnn_forward(params, x, edge_index, edge_weight, softmax=True):
    N, F0 = x.shape
    graph_ws = params["graph"]
    mlp_ps = params["mlp"]
    Ks = tuple(int(W.shape[0]) for W in graph_ws)
    n_mlp = len(mlp_ps)

    # Padded sizes: nodes -> sublane multiple (8), features -> lane multiple (128).
    NP = _round_up(N, _SUBLANE)
    n_classes = int(mlp_ps[-1][0].shape[1]) if n_mlp else int(graph_ws[-1].shape[2])
    CP = _round_up(n_classes, _LANE)

    # Dense shift operator (scatter-add glue); bf16 halves its VMEM footprint.
    S = build_shift_operator(edge_index, edge_weight, N, normalize=True)
    S = _pad2(S, NP, NP).astype(jnp.bfloat16)

    x_p = _pad2(x.astype(jnp.float32), NP, _round_up(F0, _LANE))

    inputs = [S, x_p]
    for W in graph_ws:                       # [K, Fin, Fout] -> [K*FinP, FoutP]
        K, Fin, Fout = W.shape
        FinP, FoutP = _round_up(Fin, _LANE), _round_up(Fout, _LANE)
        Wp = jnp.pad(W, ((0, 0), (0, FinP - Fin), (0, FoutP - Fout)))
        inputs.append(Wp.reshape(K * FinP, FoutP).astype(jnp.bfloat16))
    for (W, b) in mlp_ps:                    # [Fin, Fout], [1, Fout]
        Fin, Fout = W.shape
        FinP, FoutP = _round_up(Fin, _LANE), _round_up(Fout, _LANE)
        inputs.append(_pad2(W, FinP, FoutP).astype(jnp.bfloat16))
        inputs.append(_pad2(b.astype(jnp.float32), 1, FoutP))

    kernel = functools.partial(
        _fused_gnn_kernel, Ks=Ks, n_mlp=n_mlp, n_classes=n_classes,
        apply_softmax=softmax)

    # Explicit scoped-VMEM budget: S + weights + activations are all resident,
    # so request what we use (plus headroom), capped at v7x's 64 MiB VMEM.
    in_bytes = sum(int(np.prod(a.shape)) * a.dtype.itemsize for a in inputs)
    vmem_limit = int(min(max(2 * in_bytes + (8 << 20), 32 << 20), 64 << 20))
    # TODO(synk): for very large N (S no longer fits the VMEM budget) stream S
    # in row tiles with a grid/BlockSpec (row axis "parallel" for v7x's 2 TCs)
    # while keeping z / acc resident in VMEM scratch.

    out = pl.pallas_call(
        kernel,
        out_shape=jax.ShapeDtypeStruct((NP, CP), jnp.float32),
        in_specs=[_VMEM] * len(inputs),
        out_specs=_VMEM,
        compiler_params=pltpu.CompilerParams(vmem_limit_bytes=vmem_limit),
    )(*inputs)

    return out[:N, :n_classes]


# ----------------------------------------------------------------------------
# Pure-JAX references (mirror the PyTorch forward) for correctness checks
# ----------------------------------------------------------------------------
def gnn_forward_ref(params, x, edge_index, edge_weight, softmax=True,
                    emulate_bf16=False):
    cast = (lambda a: a.astype(jnp.bfloat16)) if emulate_bf16 else (lambda a: a)
    N = x.shape[0]
    S = cast(build_shift_operator(edge_index, edge_weight, N, normalize=True))
    y = x.astype(jnp.float32)
    for W in params["graph"]:
        K = W.shape[0]
        z = cast(y)
        acc = jnp.dot(z, cast(W[0]), preferred_element_type=jnp.float32)
        for k in range(1, K):
            z = cast(jnp.dot(S, z, preferred_element_type=jnp.float32))
            acc = acc + jnp.dot(z, cast(W[k]), preferred_element_type=jnp.float32)
        y = jnp.maximum(acc, 0.0)
    for (Wm, b) in params["mlp"]:
        y = jnp.dot(cast(y), cast(Wm), preferred_element_type=jnp.float32) + b
    if softmax:
        y = jax.nn.log_softmax(y, axis=1)
    return y


if __name__ == "__main__":
    # Small synthetic graph: N nodes, Fin features.
    N = 16
    Flist = [8, 16, 8]       # two GraphFilter layers
    Klist = [3, 2]           # filter taps per layer
    MLPlist = [8, 32, 4]     # two Linear layers
    E = 48

    key = jax.random.PRNGKey(0)
    kx, ke, kw, kp = jax.random.split(key, 4)

    x = jax.random.normal(kx, (N, Flist[0]), jnp.float32)
    edge_index = jax.random.randint(ke, (2, E), 0, N, jnp.int32)
    edge_weight = jax.random.uniform(kw, (E,), jnp.float32, 0.5, 1.5)

    params = init_gnn_params(kp, Flist, Klist, MLPlist)

    y = gnn_forward(params, x, edge_index, edge_weight, softmax=True)
    y = jax.block_until_ready(y)

    # Structural check vs. a reference doing the same bf16-in / f32-acc matmuls
    # (catches any padding / tap-concat / mask bug in the fused kernel).
    y_bf16 = gnn_forward_ref(params, x, edge_index, edge_weight,
                             softmax=True, emulate_bf16=True)
    np.testing.assert_allclose(np.asarray(y), np.asarray(y_bf16),
                               rtol=1e-2, atol=1e-2)

    # Semantics check vs. the full-f32 PyTorch-equivalent math. Tolerance is
    # loose because the kernel feeds the MXU bf16 operands (f32 accumulate).
    y_f32 = gnn_forward_ref(params, x, edge_index, edge_weight,
                            softmax=True, emulate_bf16=False)
    np.testing.assert_allclose(np.asarray(y), np.asarray(y_f32),
                               rtol=1e-1, atol=1e-1)

    print("KERNEL_OK")
</pallas_src>

<mosaic_0001>
module attributes {stable_mosaic.version = 11 : i64} {
  func.func @_fused_gnn_kernel(%arg0: memref<16x16xbf16, #tpu.memory_space<vmem>>, %arg1: memref<16x128xf32, #tpu.memory_space<vmem>>, %arg2: memref<384x128xbf16, #tpu.memory_space<vmem>>, %arg3: memref<256x128xbf16, #tpu.memory_space<vmem>>, %arg4: memref<128x128xbf16, #tpu.memory_space<vmem>>, %arg5: memref<1x128xf32, #tpu.memory_space<vmem>>, %arg6: memref<128x128xbf16, #tpu.memory_space<vmem>>, %arg7: memref<1x128xf32, #tpu.memory_space<vmem>>, %arg8: memref<16x128xf32, #tpu.memory_space<vmem>>) attributes {dimension_semantics = [], scalar_prefetch = 0 : i64, scratch_operands = 0 : i64, tpu.core_type = #tpu.core_type<tc>} {
    %c0 = arith.constant 0 : index
    %c0_0 = arith.constant 0 : index
    %0 = vector.load %arg0[%c0, %c0_0] : memref<16x16xbf16, #tpu.memory_space<vmem>>, vector<16x16xbf16>
    %c0_1 = arith.constant 0 : index
    %c0_2 = arith.constant 0 : index
    %1 = vector.load %arg1[%c0_1, %c0_2] : memref<16x128xf32, #tpu.memory_space<vmem>>, vector<16x128xf32>
    %2 = arith.truncf %1 : vector<16x128xf32> to vector<16x128xbf16>
    %cst = arith.constant dense<0.000000e+00> : vector<16x128xf32>
    %3 = tpu.matmul %0, %2, %cst {dimension_numbers = #tpu.dot_dimension_numbers<[1], [0], [0], [1], [0, 0, 1, 1], [], []>} : vector<16x16xbf16>, vector<16x128xbf16>, vector<16x128xf32> -> vector<16x128xf32>
    %4 = arith.truncf %3 : vector<16x128xf32> to vector<16x128xbf16>
    %cst_3 = arith.constant dense<0.000000e+00> : vector<16x128xf32>
    %5 = tpu.matmul %0, %4, %cst_3 {dimension_numbers = #tpu.dot_dimension_numbers<[1], [0], [0], [1], [0, 0, 1, 1], [], []>} : vector<16x16xbf16>, vector<16x128xbf16>, vector<16x128xf32> -> vector<16x128xf32>
    %6 = arith.truncf %5 : vector<16x128xf32> to vector<16x128xbf16>
    %7 = tpu.concatenate %2, %4, %6 in 1 : vector<16x128xbf16>, vector<16x128xbf16>, vector<16x128xbf16> -> vector<16x384xbf16>
    %c0_4 = arith.constant 0 : index
    %c0_5 = arith.constant 0 : index
    %8 = vector.load %arg2[%c0_4, %c0_5] : memref<384x128xbf16, #tpu.memory_space<vmem>>, vector<384x128xbf16>
    %cst_6 = arith.constant dense<0.000000e+00> : vector<16x128xf32>
    %9 = tpu.matmul %7, %8, %cst_6 {dimension_numbers = #tpu.dot_dimension_numbers<[1], [0], [0], [1], [0, 0, 1, 1], [], []>} : vector<16x384xbf16>, vector<384x128xbf16>, vector<16x128xf32> -> vector<16x128xf32>
    %cst_7 = arith.constant 0.000000e+00 : f32
    %10 = vector.broadcast %cst_7 : f32 to vector<16x128xf32>
    %11 = arith.maximumf %9, %10 : vector<16x128xf32>
    %12 = arith.truncf %11 : vector<16x128xf32> to vector<16x128xbf16>
    %cst_8 = arith.constant dense<0.000000e+00> : vector<16x128xf32>
    %13 = tpu.matmul %0, %12, %cst_8 {dimension_numbers = #tpu.dot_dimension_numbers<[1], [0], [0], [1], [0, 0, 1, 1], [], []>} : vector<16x16xbf16>, vector<16x128xbf16>, vector<16x128xf32> -> vector<16x128xf32>
    %14 = arith.truncf %13 : vector<16x128xf32> to vector<16x128xbf16>
    %15 = tpu.concatenate %12, %14 in 1 : vector<16x128xbf16>, vector<16x128xbf16> -> vector<16x256xbf16>
    %c0_9 = arith.constant 0 : index
    %c0_10 = arith.constant 0 : index
    %16 = vector.load %arg3[%c0_9, %c0_10] : memref<256x128xbf16, #tpu.memory_space<vmem>>, vector<256x128xbf16>
    %cst_11 = arith.constant dense<0.000000e+00> : vector<16x128xf32>
    %17 = tpu.matmul %15, %16, %cst_11 {dimension_numbers = #tpu.dot_dimension_numbers<[1], [0], [0], [1], [0, 0, 1, 1], [], []>} : vector<16x256xbf16>, vector<256x128xbf16>, vector<16x128xf32> -> vector<16x128xf32>
    %cst_12 = arith.constant 0.000000e+00 : f32
    %18 = vector.broadcast %cst_12 : f32 to vector<16x128xf32>
    %19 = arith.maximumf %17, %18 : vector<16x128xf32>
    %c0_13 = arith.constant 0 : index
    %c0_14 = arith.constant 0 : index
    %20 = vector.load %arg4[%c0_13, %c0_14] : memref<128x128xbf16, #tpu.memory_space<vmem>>, vector<128x128xbf16>
    %c0_15 = arith.constant 0 : index
    %c0_16 = arith.constant 0 : index
    %21 = vector.load %arg5[%c0_15, %c0_16] : memref<1x128xf32, #tpu.memory_space<vmem>>, vector<1x128xf32>
    %22 = arith.truncf %19 : vector<16x128xf32> to vector<16x128xbf16>
    %cst_17 = arith.constant dense<0.000000e+00> : vector<16x128xf32>
    %23 = tpu.matmul %22, %20, %cst_17 {dimension_numbers = #tpu.dot_dimension_numbers<[1], [0], [0], [1], [0, 0, 1, 1], [], []>} : vector<16x128xbf16>, vector<128x128xbf16>, vector<16x128xf32> -> vector<16x128xf32>
    %24 = vector.broadcast %21 : vector<1x128xf32> to vector<16x128xf32>
    %25 = arith.addf %23, %24 : vector<16x128xf32>
    %c0_18 = arith.constant 0 : index
    %c0_19 = arith.constant 0 : index
    %26 = vector.load %arg6[%c0_18, %c0_19] : memref<128x128xbf16, #tpu.memory_space<vmem>>, vector<128x128xbf16>
    %c0_20 = arith.constant 0 : index
    %c0_21 = arith.constant 0 : index
    %27 = vector.load %arg7[%c0_20, %c0_21] : memref<1x128xf32, #tpu.memory_space<vmem>>, vector<1x128xf32>
    %28 = arith.truncf %25 : vector<16x128xf32> to vector<16x128xbf16>
    %cst_22 = arith.constant dense<0.000000e+00> : vector<16x128xf32>
    %29 = tpu.matmul %28, %26, %cst_22 {dimension_numbers = #tpu.dot_dimension_numbers<[1], [0], [0], [1], [0, 0, 1, 1], [], []>} : vector<16x128xbf16>, vector<128x128xbf16>, vector<16x128xf32> -> vector<16x128xf32>
    %30 = vector.broadcast %27 : vector<1x128xf32> to vector<16x128xf32>
    %31 = arith.addf %29, %30 : vector<16x128xf32>
    %32 = tpu.iota {dimensions = array<i32: 1>} : vector<16x128xi32>
    %c4_i32 = arith.constant 4 : i32
    %33 = vector.broadcast %c4_i32 : i32 to vector<16x128xi32>
    %34 = arith.cmpi slt, %32, %33 : vector<16x128xi32>
    %cst_23 = arith.constant -1.000000e+30 : f32
    %35 = vector.broadcast %cst_23 : f32 to vector<16x128xf32>
    %36 = arith.select %34, %31, %35 : vector<16x128xi1>, vector<16x128xf32>
    %cst_24 = arith.constant dense<0xFF800000> : vector<16xf32>
    %37 = vector.multi_reduction <maximumf>, %36, %cst_24 [1] : vector<16x128xf32> to vector<16xf32>
    %38 = vector.shape_cast %37 : vector<16xf32> to vector<16x1xf32>
    %39 = vector.broadcast %38 : vector<16x1xf32> to vector<16x128xf32>
    %40 = arith.subf %36, %39 : vector<16x128xf32>
    %41 = math.exp %40 : vector<16x128xf32>
    %cst_25 = arith.constant 0.000000e+00 : f32
    %42 = vector.broadcast %cst_25 : f32 to vector<16x128xf32>
    %43 = arith.select %34, %41, %42 : vector<16x128xi1>, vector<16x128xf32>
    %cst_26 = arith.constant dense<0.000000e+00> : vector<16xf32>
    %44 = vector.multi_reduction <add>, %43, %cst_26 [1] : vector<16x128xf32> to vector<16xf32>
    %45 = vector.shape_cast %44 : vector<16xf32> to vector<16x1xf32>
    %46 = math.log %45 : vector<16x1xf32>
    %47 = vector.broadcast %46 : vector<16x1xf32> to vector<16x128xf32>
    %48 = arith.subf %40, %47 : vector<16x128xf32>
    %c0_27 = arith.constant 0 : index
    %c0_28 = arith.constant 0 : index
    %49 = vector.load %arg8[%c0_27, %c0_28] : memref<16x128xf32, #tpu.memory_space<vmem>>, vector<16x128xf32>
    tpu.vector_store %arg8[%c0_27, %c0_28], %48 {strides = array<i32>} : memref<16x128xf32, #tpu.memory_space<vmem>>, vector<16x128xf32>,
    return
  }
}

</mosaic_0001>

<llo_original>
// kernel: gnn_forward.1
$region0: #{gnn_forward.1}
  #allocation0 [shape = 'u32[]', space=smem, size = 0x4, offset = 0x4, fixed_abs, tag = 'smem constant byte address 0x4 - core index']
  #allocation1 [shape = 'u32[72,128]{1,0:T(1,128)}', space=vmem, size = 0x9000, scoped, tag = 'internal scratch']
  %s0 = inlined_call_operand.vmem [shape: bf16[16,16], index: 0, kind: input, shape index: {}]
  %s1 = inlined_call_operand.vmem [shape: f32[16,128], index: 1, kind: input, shape index: {}]
  %s2 = inlined_call_operand.vmem [shape: bf16[384,128], index: 2, kind: input, shape index: {}]
  %s3 = inlined_call_operand.vmem [shape: bf16[256,128], index: 3, kind: input, shape index: {}]
  %s4 = inlined_call_operand.vmem [shape: bf16[128,128], index: 4, kind: input, shape index: {}]
  %s5 = inlined_call_operand.vmem [shape: f32[1,128], index: 5, kind: input, shape index: {}]
  %s6 = inlined_call_operand.vmem [shape: bf16[128,128], index: 6, kind: input, shape index: {}]
  %s7 = inlined_call_operand.vmem [shape: f32[1,128], index: 7, kind: input, shape index: {}]
  %s8 = inlined_call_operand.vmem [shape: f32[16,128], index: 8, kind: output, shape index: {}]
  %s9 = sld [smem:[#allocation0]]
  $region42: #{gnn_forward.1} parent=0
    _
  %s11 = ssub.s32 1, %s9
  %s12 = scalar_select 0, %s11, %s9
  // Predicated region
  $region2: #{gnn_forward.1} parent=0 // pred_check
    _
  $region3: #{gnn_forward.1} parent=0 // pred_check_branch
    %14 = sbr.rel (0) target = $region5
  $region4: #{gnn_forward.1} parent=0 // pred_region
    _
  $region5: #{gnn_forward.1} parent=0 // pred_fallthru
    _
  // Predicated region
  $region6: #{gnn_forward.1} parent=0 // pred_check
    _
  $region7: #{gnn_forward.1} parent=0 // pred_check_branch
    %16 = sbr.rel (0) target = $region9
  $region8: #{gnn_forward.1} parent=0 // pred_region
    _
  $region9: #{gnn_forward.1} parent=0 // pred_fallthru
    _
  // Predicated region
  $region10: #{gnn_forward.1} parent=0 // pred_check
    _
  $region11: #{gnn_forward.1} parent=0 // pred_check_branch
    %18 = sbr.rel (0) target = $region13
  $region12: #{gnn_forward.1} parent=0 // pred_region
    _
  $region13: #{gnn_forward.1} parent=0 // pred_fallthru
    _
  // Predicated region
  $region14: #{gnn_forward.1} parent=0 // pred_check
    _
  $region15: #{gnn_forward.1} parent=0 // pred_check_branch
    %20 = sbr.rel (0) target = $region17
  $region16: #{gnn_forward.1} parent=0 // pred_region
    _
  $region17: #{gnn_forward.1} parent=0 // pred_fallthru
    _
  // Predicated region
  $region18: #{gnn_forward.1} parent=0 // pred_check
    _
  $region19: #{gnn_forward.1} parent=0 // pred_check_branch
    %22 = sbr.rel (0) target = $region21
  $region20: #{gnn_forward.1} parent=0 // pred_region
    _
  $region21: #{gnn_forward.1} parent=0 // pred_fallthru
    _
  // Predicated region
  $region22: #{gnn_forward.1} parent=0 // pred_check
    _
  $region23: #{gnn_forward.1} parent=0 // pred_check_branch
    %24 = sbr.rel (0) target = $region25
  $region24: #{gnn_forward.1} parent=0 // pred_region
    _
  $region25: #{gnn_forward.1} parent=0 // pred_fallthru
    _
  // Predicated region
  $region26: #{gnn_forward.1} parent=0 // pred_check
    _
  $region27: #{gnn_forward.1} parent=0 // pred_check_branch
    %26 = sbr.rel (0) target = $region29
  $region28: #{gnn_forward.1} parent=0 // pred_region
    _
  $region29: #{gnn_forward.1} parent=0 // pred_fallthru
    _
  // Predicated region
  $region30: #{gnn_forward.1} parent=0 // pred_check
    _
  $region31: #{gnn_forward.1} parent=0 // pred_check_branch
    %28 = sbr.rel (0) target = $region33
  $region32: #{gnn_forward.1} parent=0 // pred_region
    _
  $region33: #{gnn_forward.1} parent=0 // pred_fallthru
    _
  %v30 = vld [vmem:[%s0] sm:$0xf]
  %v31 = vld [vmem:[%s0 + $0x4] sm:$0xf]
  %v32 = vld [vmem:[%s1] sm:$0xff]
  %v33 = vld [vmem:[%s1 + $0x8] sm:$0xff]
  %v34 = vpack.c.bf16 %v32, %v32
  %v35 = vpack.c.bf16 %v33, %v33
  %v38 = vunpack.c.l.b16 %v30
  %v39 = vunpack.c.l.b16 %v31
  %v40 = vpack.c.b16 %v39, %v38
  %v43 = vunpack.c.l.b16 %v34
  %v44 = vunpack.c.l.b16 %v35
  %v45 = vpack.c.b16 %v44, %v43
  %vm47 = vcmask 130048
  %v49 = vsel %vm47, %v40, 0
  %51 = vmatpush.bf16.msra.mxu0 0
  %52 = vmatpush.bf16.msra.mxu0 0
  %53 = vmatpush.bf16.msra.mxu0 0
  %54 = vmatpush.bf16.msra.mxu0 0
  %55 = vmatpush.bf16.msra.mxu0 0
  %56 = vmatpush.bf16.msra.mxu0 0
  %57 = vmatpush.bf16.msra.mxu0 0
  %58 = vmatpush.bf16.msra.mxu0 %v45
  %59 = vmatmul.bf16.gmra.mxu0 %v49
  %v60 = vpop.f32.mrf.mxu0
  %v61 = vadd.f32 0.0, %v60
  %v62 = vpop.f32.mrf.mxu0
  %v63 = vadd.f32 0.0, %v62
  %64 = vdwg.mxu0
  %v65 = vpack.c.bf16 %v61, %v61
  %v66 = vpack.c.bf16 %v63, %v63
  %v69 = vunpack.c.l.b16 %v65
  %v70 = vunpack.c.l.b16 %v66
  %v71 = vpack.c.b16 %v70, %v69
  %73 = vmatpush.bf16.msra.mxu0 0
  %74 = vmatpush.bf16.msra.mxu0 0
  %75 = vmatpush.bf16.msra.mxu0 0
  %76 = vmatpush.bf16.msra.mxu0 0
  %77 = vmatpush.bf16.msra.mxu0 0
  %78 = vmatpush.bf16.msra.mxu0 0
  %79 = vmatpush.bf16.msra.mxu0 0
  %80 = vmatpush.bf16.msra.mxu0 %v71
  %81 = vmatmul.bf16.gmra.mxu0 %v49
  %v82 = vpop.f32.mrf.mxu0
  %v83 = vadd.f32 0.0, %v82
  %v84 = vpop.f32.mrf.mxu0
  %v85 = vadd.f32 0.0, %v84
  %86 = vdwg.mxu0
  %v87 = vpack.c.bf16 %v83, %v83
  %v88 = vpack.c.bf16 %v85, %v85
  %v91 = vunpack.c.l.b16 %v87
  %v92 = vunpack.c.l.b16 %v88
  %v93 = vpack.c.b16 %v92, %v91
  %v95 = vld [vmem:[%s2] sm:$0xf]
  %v96 = vld [vmem:[%s2 + $0x4] sm:$0xf]
  %v97 = vld [vmem:[%s2 + $0x8] sm:$0xf]
  %v98 = vld [vmem:[%s2 + $0xc] sm:$0xf]
  %v99 = vld [vmem:[%s2 + $0x10] sm:$0xf]
  %v100 = vld [vmem:[%s2 + $0x14] sm:$0xf]
  %v101 = vld [vmem:[%s2 + $0x18] sm:$0xf]
  %v102 = vld [vmem:[%s2 + $0x1c] sm:$0xf]
  %v103 = vld [vmem:[%s2 + $0x20] sm:$0xf]
  %v104 = vld [vmem:[%s2 + $0x24] sm:$0xf]
  %v105 = vld [vmem:[%s2 + $0x28] sm:$0xf]
  %v106 = vld [vmem:[%s2 + $0x2c] sm:$0xf]
  %v107 = vld [vmem:[%s2 + $0x30] sm:$0xf]
  %v108 = vld [vmem:[%s2 + $0x34] sm:$0xf]
  %v109 = vld [vmem:[%s2 + $0x38] sm:$0xf]
  %v110 = vld [vmem:[%s2 + $0x3c] sm:$0xf]
  %v111 = vld [vmem:[%s2 + $0x40] sm:$0xf]
  %v112 = vld [vmem:[%s2 + $0x44] sm:$0xf]
  %v113 = vld [vmem:[%s2 + $0x48] sm:$0xf]
  %v114 = vld [vmem:[%s2 + $0x4c] sm:$0xf]
  %v115 = vld [vmem:[%s2 + $0x50] sm:$0xf]
  %v116 = vld [vmem:[%s2 + $0x54] sm:$0xf]
  %v117 = vld [vmem:[%s2 + $0x58] sm:$0xf]
  %v118 = vld [vmem:[%s2 + $0x5c] sm:$0xf]
  %v119 = vld [vmem:[%s2 + $0x60] sm:$0xf]
  %v120 = vld [vmem:[%s2 + $0x64] sm:$0xf]
  %v121 = vld [vmem:[%s2 + $0x68] sm:$0xf]
  %v122 = vld [vmem:[%s2 + $0x6c] sm:$0xf]
  %v123 = vld [vmem:[%s2 + $0x70] sm:$0xf]
  %v124 = vld [vmem:[%s2 + $0x74] sm:$0xf]
  %v125 = vld [vmem:[%s2 + $0x78] sm:$0xf]
  %v126 = vld [vmem:[%s2 + $0x7c] sm:$0xf]
  %v127 = vld [vmem:[%s2 + $0x80] sm:$0xf]
  %v128 = vld [vmem:[%s2 + $0x84] sm:$0xf]
  %v129 = vld [vmem:[%s2 + $0x88] sm:$0xf]
  %v130 = vld [vmem:[%s2 + $0x8c] sm:$0xf]
  %v131 = vld [vmem:[%s2 + $0x90] sm:$0xf]
  %v132 = vld [vmem:[%s2 + $0x94] sm:$0xf]
  %v133 = vld [vmem:[%s2 + $0x98] sm:$0xf]
  %v134 = vld [vmem:[%s2 + $0x9c] sm:$0xf]
  %v135 = vld [vmem:[%s2 + $0xa0] sm:$0xf]
  %v136 = vld [vmem:[%s2 + $0xa4] sm:$0xf]
  %v137 = vld [vmem:[%s2 + $0xa8] sm:$0xf]
  %v138 = vld [vmem:[%s2 + $0xac] sm:$0xf]
  %v139 = vld [vmem:[%s2 + $0xb0] sm:$0xf]
  %v140 = vld [vmem:[%s2 + $0xb4] sm:$0xf]
  %v141 = vld [vmem:[%s2 + $0xb8] sm:$0xf]
  %v142 = vld [vmem:[%s2 + $0xbc] sm:$0xf]
  %v191 = vunpack.c.l.b16 %v95
  %v192 = vunpack.c.l.b16 %v96
  %v193 = vunpack.c.l.b16 %v97
  %v194 = vunpack.c.l.b16 %v98
  %v195 = vunpack.c.l.b16 %v99
  %v196 = vunpack.c.l.b16 %v100
  %v197 = vunpack.c.l.b16 %v101
  %v198 = vunpack.c.l.b16 %v102
  %v199 = vunpack.c.l.b16 %v103
  %v200 = vunpack.c.l.b16 %v104
  %v201 = vunpack.c.l.b16 %v105
  %v202 = vunpack.c.l.b16 %v106
  %v203 = vunpack.c.l.b16 %v107
  %v204 = vunpack.c.l.b16 %v108
  %v205 = vunpack.c.l.b16 %v109
  %v206 = vunpack.c.l.b16 %v110
  %v207 = vunpack.c.l.b16 %v111
  %v208 = vunpack.c.l.b16 %v112
  %v209 = vunpack.c.l.b16 %v113
  %v210 = vunpack.c.l.b16 %v114
  %v211 = vunpack.c.l.b16 %v115
  %v212 = vunpack.c.l.b16 %v116
  %v213 = vunpack.c.l.b16 %v117
  %v214 = vunpack.c.l.b16 %v118
  %v215 = vunpack.c.l.b16 %v119
  %v216 = vunpack.c.l.b16 %v120
  %v217 = vunpack.c.l.b16 %v121
  %v218 = vunpack.c.l.b16 %v122
  %v219 = vunpack.c.l.b16 %v123
  %v220 = vunpack.c.l.b16 %v124
  %v221 = vunpack.c.l.b16 %v125
  %v222 = vunpack.c.l.b16 %v126
  %v223 = vunpack.c.l.b16 %v127
  %v224 = vunpack.c.l.b16 %v128
  %v225 = vunpack.c.l.b16 %v129
  %v226 = vunpack.c.l.b16 %v130
  %v227 = vunpack.c.l.b16 %v131
  %v228 = vunpack.c.l.b16 %v132
  %v229 = vunpack.c.l.b16 %v133
  %v230 = vunpack.c.l.b16 %v134
  %v231 = vunpack.c.l.b16 %v135
  %v232 = vunpack.c.l.b16 %v136
  %v233 = vunpack.c.l.b16 %v137
  %v234 = vunpack.c.l.b16 %v138
  %v235 = vunpack.c.l.b16 %v139
  %v236 = vunpack.c.l.b16 %v140
  %v237 = vunpack.c.l.b16 %v141
  %v238 = vunpack.c.l.b16 %v142
  %v239 = vpack.c.b16 %v192, %v191
  %v240 = vpack.c.b16 %v194, %v193
  %v241 = vpack.c.b16 %v196, %v195
  %v242 = vpack.c.b16 %v198, %v197
  %v243 = vpack.c.b16 %v200, %v199
  %v244 = vpack.c.b16 %v202, %v201
  %v245 = vpack.c.b16 %v204, %v203
  %v246 = vpack.c.b16 %v206, %v205
  %v247 = vpack.c.b16 %v208, %v207
  %v248 = vpack.c.b16 %v210, %v209
  %v249 = vpack.c.b16 %v212, %v211
  %v250 = vpack.c.b16 %v214, %v213
  %v251 = vpack.c.b16 %v216, %v215
  %v252 = vpack.c.b16 %v218, %v217
  %v253 = vpack.c.b16 %v220, %v219
  %v254 = vpack.c.b16 %v222, %v221
  %v255 = vpack.c.b16 %v224, %v223
  %v256 = vpack.c.b16 %v226, %v225
  %v257 = vpack.c.b16 %v228, %v227
  %v258 = vpack.c.b16 %v230, %v229
  %v259 = vpack.c.b16 %v232, %v231
  %v260 = vpack.c.b16 %v234, %v233
  %v261 = vpack.c.b16 %v236, %v235
  %v262 = vpack.c.b16 %v238, %v237
  %287 = vmatpush.bf16.msra.mxu0 %v246
  %288 = vmatpush.bf16.msra.mxu0 %v245
  %289 = vmatpush.bf16.msra.mxu0 %v244
  %290 = vmatpush.bf16.msra.mxu0 %v243
  %291 = vmatpush.bf16.msra.mxu0 %v242
  %292 = vmatpush.bf16.msra.mxu0 %v241
  %293 = vmatpush.bf16.msra.mxu0 %v240
  %294 = vmatpush.bf16.msra.mxu0 %v239
  %295 = vmatmul.bf16.gmra.mxu0 %v45
  %v296 = vpop.f32.mrf.mxu0
  %v297 = vadd.f32 0.0, %v296
  %v298 = vpop.f32.mrf.mxu0
  %v299 = vadd.f32 0.0, %v298
  %300 = vdwg.mxu0
  %301 = vmatpush.bf16.msra.mxu0 %v254
  %302 = vmatpush.bf16.msra.mxu0 %v253
  %303 = vmatpush.bf16.msra.mxu0 %v252
  %304 = vmatpush.bf16.msra.mxu0 %v251
  %305 = vmatpush.bf16.msra.mxu0 %v250
  %306 = vmatpush.bf16.msra.mxu0 %v249
  %307 = vmatpush.bf16.msra.mxu0 %v248
  %308 = vmatpush.bf16.msra.mxu0 %v247
  %309 = vmatmul.bf16.gmra.mxu0 %v71
  %v310 = vpop.f32.mrf.mxu0
  %v311 = vadd.f32 %v297, %v310
  %v312 = vpop.f32.mrf.mxu0
  %v313 = vadd.f32 %v299, %v312
  %314 = vdwg.mxu0
  %315 = vmatpush.bf16.msra.mxu0 %v262
  %316 = vmatpush.bf16.msra.mxu0 %v261
  %317 = vmatpush.bf16.msra.mxu0 %v260
  %318 = vmatpush.bf16.msra.mxu0 %v259
  %319 = vmatpush.bf16.msra.mxu0 %v258
  %320 = vmatpush.bf16.msra.mxu0 %v257
  %321 = vmatpush.bf16.msra.mxu0 %v256
  %322 = vmatpush.bf16.msra.mxu0 %v255
  %323 = vmatmul.bf16.gmra.mxu0 %v93
  %v324 = vpop.f32.mrf.mxu0
  %v325 = vadd.f32 %v311, %v324
  %v326 = vpop.f32.mrf.mxu0
  %v327 = vadd.f32 %v313, %v326
  %328 = vdwg.mxu0
  %v329 = vmax.f32 %v325, 0.0
  %v330 = vmax.f32 %v327, 0.0
  %v331 = vpack.c.bf16 %v329, %v329
  %v332 = vpack.c.bf16 %v330, %v330
  %v335 = vunpack.c.l.b16 %v331
  %v336 = vunpack.c.l.b16 %v332
  %v337 = vpack.c.b16 %v336, %v335
  %339 = vmatpush.bf16.msra.mxu0 0
  %340 = vmatpush.bf16.msra.mxu0 0
  %341 = vmatpush.bf16.msra.mxu0 0
  %342 = vmatpush.bf16.msra.mxu0 0
  %343 = vmatpush.bf16.msra.mxu0 0
  %344 = vmatpush.bf16.msra.mxu0 0
  %345 = vmatpush.bf16.msra.mxu0 0
  %346 = vmatpush.bf16.msra.mxu0 %v337
  %347 = vmatmul.bf16.gmra.mxu0 %v49
  %v348 = vpop.f32.mrf.mxu0
  %v349 = vadd.f32 0.0, %v348
  %v350 = vpop.f32.mrf.mxu0
  %v351 = vadd.f32 0.0, %v350
  %352 = vdwg.mxu0
  %v353 = vpack.c.bf16 %v349, %v349
  %v354 = vpack.c.bf16 %v351, %v351
  %v357 = vunpack.c.l.b16 %v353
  %v358 = vunpack.c.l.b16 %v354
  %v359 = vpack.c.b16 %v358, %v357
  %v361 = vld [vmem:[%s3] sm:$0xf]
  %v362 = vld [vmem:[%s3 + $0x4] sm:$0xf]
  %v363 = vld [vmem:[%s3 + $0x8] sm:$0xf]
  %v364 = vld [vmem:[%s3 + $0xc] sm:$0xf]
  %v365 = vld [vmem:[%s3 + $0x10] sm:$0xf]
  %v366 = vld [vmem:[%s3 + $0x14] sm:$0xf]
  %v367 = vld [vmem:[%s3 + $0x18] sm:$0xf]
  %v368 = vld [vmem:[%s3 + $0x1c] sm:$0xf]
  %v369 = vld [vmem:[%s3 + $0x20] sm:$0xf]
  %v370 = vld [vmem:[%s3 + $0x24] sm:$0xf]
  %v371 = vld [vmem:[%s3 + $0x28] sm:$0xf]
  %v372 = vld [vmem:[%s3 + $0x2c] sm:$0xf]
  %v373 = vld [vmem:[%s3 + $0x30] sm:$0xf]
  %v374 = vld [vmem:[%s3 + $0x34] sm:$0xf]
  %v375 = vld [vmem:[%s3 + $0x38] sm:$0xf]
  %v376 = vld [vmem:[%s3 + $0x3c] sm:$0xf]
  %v377 = vld [vmem:[%s3 + $0x40] sm:$0xf]
  %v378 = vld [vmem:[%s3 + $0x44] sm:$0xf]
  %v379 = vld [vmem:[%s3 + $0x48] sm:$0xf]
  %v380 = vld [vmem:[%s3 + $0x4c] sm:$0xf]
  %v381 = vld [vmem:[%s3 + $0x50] sm:$0xf]
  %v382 = vld [vmem:[%s3 + $0x54] sm:$0xf]
  %v383 = vld [vmem:[%s3 + $0x58] sm:$0xf]
  %v384 = vld [vmem:[%s3 + $0x5c] sm:$0xf]
  %v385 = vld [vmem:[%s3 + $0x60] sm:$0xf]
  %v386 = vld [vmem:[%s3 + $0x64] sm:$0xf]
  %v387 = vld [vmem:[%s3 + $0x68] sm:$0xf]
  %v388 = vld [vmem:[%s3 + $0x6c] sm:$0xf]
  %v389 = vld [vmem:[%s3 + $0x70] sm:$0xf]
  %v390 = vld [vmem:[%s3 + $0x74] sm:$0xf]
  %v391 = vld [vmem:[%s3 + $0x78] sm:$0xf]
  %v392 = vld [vmem:[%s3 + $0x7c] sm:$0xf]
  %v425 = vunpack.c.l.b16 %v361
  %v426 = vunpack.c.l.b16 %v362
  %v427 = vunpack.c.l.b16 %v363
  %v428 = vunpack.c.l.b16 %v364
  %v429 = vunpack.c.l.b16 %v365
  %v430 = vunpack.c.l.b16 %v366
  %v431 = vunpack.c.l.b16 %v367
  %v432 = vunpack.c.l.b16 %v368
  %v433 = vunpack.c.l.b16 %v369
  %v434 = vunpack.c.l.b16 %v370
  %v435 = vunpack.c.l.b16 %v371
  %v436 = vunpack.c.l.b16 %v372
  %v437 = vunpack.c.l.b16 %v373
  %v438 = vunpack.c.l.b16 %v374
  %v439 = vunpack.c.l.b16 %v375
  %v440 = vunpack.c.l.b16 %v376
  %v441 = vunpack.c.l.b16 %v377
  %v442 = vunpack.c.l.b16 %v378
  %v443 = vunpack.c.l.b16 %v379
  %v444 = vunpack.c.l.b16 %v380
  %v445 = vunpack.c.l.b16 %v381
  %v446 = vunpack.c.l.b16 %v382
  %v447 = vunpack.c.l.b16 %v383
  %v448 = vunpack.c.l.b16 %v384
  %v449 = vunpack.c.l.b16 %v385
  %v450 = vunpack.c.l.b16 %v386
  %v451 = vunpack.c.l.b16 %v387
  %v452 = vunpack.c.l.b16 %v388
  %v453 = vunpack.c.l.b16 %v389
  %v454 = vunpack.c.l.b16 %v390
  %v455 = vunpack.c.l.b16 %v391
  %v456 = vunpack.c.l.b16 %v392
  %v457 = vpack.c.b16 %v426, %v425
  %v458 = vpack.c.b16 %v428, %v427
  %v459 = vpack.c.b16 %v430, %v429
  %v460 = vpack.c.b16 %v432, %v431
  %v461 = vpack.c.b16 %v434, %v433
  %v462 = vpack.c.b16 %v436, %v435
  %v463 = vpack.c.b16 %v438, %v437
  %v464 = vpack.c.b16 %v440, %v439
  %v465 = vpack.c.b16 %v442, %v441
  %v466 = vpack.c.b16 %v444, %v443
  %v467 = vpack.c.b16 %v446, %v445
  %v468 = vpack.c.b16 %v448, %v447
  %v469 = vpack.c.b16 %v450, %v449
  %v470 = vpack.c.b16 %v452, %v451
  %v471 = vpack.c.b16 %v454, %v453
  %v472 = vpack.c.b16 %v456, %v455
  %489 = vmatpush.bf16.msra.mxu0 %v464
  %490 = vmatpush.bf16.msra.mxu0 %v463
  %491 = vmatpush.bf16.msra.mxu0 %v462
  %492 = vmatpush.bf16.msra.mxu0 %v461
  %493 = vmatpush.bf16.msra.mxu0 %v460
  %494 = vmatpush.bf16.msra.mxu0 %v459
  %495 = vmatpush.bf16.msra.mxu0 %v458
  %496 = vmatpush.bf16.msra.mxu0 %v457
  %497 = vmatmul.bf16.gmra.mxu0 %v337
  %v498 = vpop.f32.mrf.mxu0
  %v499 = vadd.f32 0.0, %v498
  %v500 = vpop.f32.mrf.mxu0
  %v501 = vadd.f32 0.0, %v500
  %502 = vdwg.mxu0
  %503 = vmatpush.bf16.msra.mxu0 %v472
  %504 = vmatpush.bf16.msra.mxu0 %v471
  %505 = vmatpush.bf16.msra.mxu0 %v470
  %506 = vmatpush.bf16.msra.mxu0 %v469
  %507 = vmatpush.bf16.msra.mxu0 %v468
  %508 = vmatpush.bf16.msra.mxu0 %v467
  %509 = vmatpush.bf16.msra.mxu0 %v466
  %510 = vmatpush.bf16.msra.mxu0 %v465
  %511 = vmatmul.bf16.gmra.mxu0 %v359
  %v512 = vpop.f32.mrf.mxu0
  %v513 = vadd.f32 %v499, %v512
  %v514 = vpop.f32.mrf.mxu0
  %v515 = vadd.f32 %v501, %v514
  %516 = vdwg.mxu0
  %v517 = vmax.f32 %v513, 0.0
  %v518 = vmax.f32 %v515, 0.0
  %v519 = vld [vmem:[%s4] sm:$0xf]
  %v520 = vld [vmem:[%s4 + $0x4] sm:$0xf]
  %v521 = vld [vmem:[%s4 + $0x8] sm:$0xf]
  %v522 = vld [vmem:[%s4 + $0xc] sm:$0xf]
  %v523 = vld [vmem:[%s4 + $0x10] sm:$0xf]
  %v524 = vld [vmem:[%s4 + $0x14] sm:$0xf]
  %v525 = vld [vmem:[%s4 + $0x18] sm:$0xf]
  %v526 = vld [vmem:[%s4 + $0x1c] sm:$0xf]
  %v527 = vld [vmem:[%s4 + $0x20] sm:$0xf]
  %v528 = vld [vmem:[%s4 + $0x24] sm:$0xf]
  %v529 = vld [vmem:[%s4 + $0x28] sm:$0xf]
  %v530 = vld [vmem:[%s4 + $0x2c] sm:$0xf]
  %v531 = vld [vmem:[%s4 + $0x30] sm:$0xf]
  %v532 = vld [vmem:[%s4 + $0x34] sm:$0xf]
  %v533 = vld [vmem:[%s4 + $0x38] sm:$0xf]
  %v534 = vld [vmem:[%s4 + $0x3c] sm:$0xf]
  %v535 = vld [vmem:[%s5] sm:$0x1]
  %v536 = vpack.c.bf16 %v518, %v517
  %v538 = vperm.slane %v535, 0
  %v556 = vunpack.c.l.b16 %v519
  %v557 = vunpack.c.l.b16 %v520
  %v558 = vunpack.c.l.b16 %v521
  %v559 = vunpack.c.l.b16 %v522
  %v560 = vunpack.c.l.b16 %v523
  %v561 = vunpack.c.l.b16 %v524
  %v562 = vunpack.c.l.b16 %v525
  %v563 = vunpack.c.l.b16 %v526
  %v564 = vunpack.c.l.b16 %v527
  %v565 = vunpack.c.l.b16 %v528
  %v566 = vunpack.c.l.b16 %v529
  %v567 = vunpack.c.l.b16 %v530
  %v568 = vunpack.c.l.b16 %v531
  %v569 = vunpack.c.l.b16 %v532
  %v570 = vunpack.c.l.b16 %v533
  %v571 = vunpack.c.l.b16 %v534
  %v572 = vpack.c.b16 %v557, %v556
  %v573 = vpack.c.b16 %v559, %v558
  %v574 = vpack.c.b16 %v561, %v560
  %v575 = vpack.c.b16 %v563, %v562
  %v576 = vpack.c.b16 %v565, %v564
  %v577 = vpack.c.b16 %v567, %v566
  %v578 = vpack.c.b16 %v569, %v568
  %v579 = vpack.c.b16 %v571, %v570
  %588 = vmatpush.bf16.msra.mxu0 %v579
  %589 = vmatpush.bf16.msra.mxu0 %v578
  %590 = vmatpush.bf16.msra.mxu0 %v577
  %591 = vmatpush.bf16.msra.mxu0 %v576
  %592 = vmatpush.bf16.msra.mxu0 %v575
  %593 = vmatpush.bf16.msra.mxu0 %v574
  %594 = vmatpush.bf16.msra.mxu0 %v573
  %595 = vmatpush.bf16.msra.mxu0 %v572
  %596 = vmatmul.bf16.gmra.mxu0 %v536
  %v597 = vpop.f32.mrf.mxu0
  %v598 = vadd.f32 %v538, %v597
  %v599 = vpop.f32.mrf.mxu0
  %v600 = vadd.f32 %v538, %v599
  %601 = vdwg.mxu0
  %v602 = vld [vmem:[%s6] sm:$0xf]
  %v603 = vld [vmem:[%s6 + $0x4] sm:$0xf]
  %v604 = vld [vmem:[%s6 + $0x8] sm:$0xf]
  %v605 = vld [vmem:[%s6 + $0xc] sm:$0xf]
  %v606 = vld [vmem:[%s6 + $0x10] sm:$0xf]
  %v607 = vld [vmem:[%s6 + $0x14] sm:$0xf]
  %v608 = vld [vmem:[%s6 + $0x18] sm:$0xf]
  %v609 = vld [vmem:[%s6 + $0x1c] sm:$0xf]
  %v610 = vld [vmem:[%s6 + $0x20] sm:$0xf]
  %v611 = vld [vmem:[%s6 + $0x24] sm:$0xf]
  %v612 = vld [vmem:[%s6 + $0x28] sm:$0xf]
  %v613 = vld [vmem:[%s6 + $0x2c] sm:$0xf]
  %v614 = vld [vmem:[%s6 + $0x30] sm:$0xf]
  %v615 = vld [vmem:[%s6 + $0x34] sm:$0xf]
  %v616 = vld [vmem:[%s6 + $0x38] sm:$0xf]
  %v617 = vld [vmem:[%s6 + $0x3c] sm:$0xf]
  %v618 = vld [vmem:[%s7] sm:$0x1]
  %v619 = vpack.c.bf16 %v600, %v598
  %v621 = vperm.slane %v618, 0
  %v639 = vunpack.c.l.b16 %v602
  %v640 = vunpack.c.l.b16 %v603
  %v641 = vunpack.c.l.b16 %v604
  %v642 = vunpack.c.l.b16 %v605
  %v643 = vunpack.c.l.b16 %v606
  %v644 = vunpack.c.l.b16 %v607
  %v645 = vunpack.c.l.b16 %v608
  %v646 = vunpack.c.l.b16 %v609
  %v647 = vunpack.c.l.b16 %v610
  %v648 = vunpack.c.l.b16 %v611
  %v649 = vunpack.c.l.b16 %v612
  %v650 = vunpack.c.l.b16 %v613
  %v651 = vunpack.c.l.b16 %v614
  %v652 = vunpack.c.l.b16 %v615
  %v653 = vunpack.c.l.b16 %v616
  %v654 = vunpack.c.l.b16 %v617
  %v655 = vpack.c.b16 %v640, %v639
  %v656 = vpack.c.b16 %v642, %v641
  %v657 = vpack.c.b16 %v644, %v643
  %v658 = vpack.c.b16 %v646, %v645
  %v659 = vpack.c.b16 %v648, %v647
  %v660 = vpack.c.b16 %v650, %v649
  %v661 = vpack.c.b16 %v652, %v651
  %v662 = vpack.c.b16 %v654, %v653
  %671 = vmatpush.bf16.msra.mxu0 %v662
  %672 = vmatpush.bf16.msra.mxu0 %v661
  %673 = vmatpush.bf16.msra.mxu0 %v660
  %674 = vmatpush.bf16.msra.mxu0 %v659
  %675 = vmatpush.bf16.msra.mxu0 %v658
  %676 = vmatpush.bf16.msra.mxu0 %v657
  %677 = vmatpush.bf16.msra.mxu0 %v656
  %678 = vmatpush.bf16.msra.mxu0 %v655
  %679 = vmatmul.bf16.gmra.mxu0 %v619
  %v680 = vpop.f32.mrf.mxu0
  %v681 = vadd.f32 %v621, %v680
  %v682 = vpop.f32.mrf.mxu0
  %v683 = vadd.f32 %v621, %v682
  %684 = vdwg.mxu0
  %v685 = vlaneseq
  %v686 = vand.u32 %v685, 127
  %vm687 = vcmp.lt.s32.totalorder %v686, 4
  %v688 = vsel %vm687, %v681, -1e+30
  %v689 = vsel %vm687, %v683, -1e+30
  %690 = vmax.xlane.f32.xlu0 %v688
  %v691 = vpop.xlane.xlu0 %690
  %692 = vmax.xlane.f32.xlu0 %v689
  %v693 = vpop.xlane.xlu0 %692
  %v694 = vsub.f32 %v688, %v691
  %v695 = vsub.f32 %v689, %v693
  %v696 = vmul.f32 %v694, 1.442695
  %v697 = vpow.pop %v696
  %v698 = vmul.f32 %v695, 1.442695
  %v699 = vpow.pop %v698
  %v700 = vsel %vm687, %v697, 0.0
  %v701 = vsel %vm687, %v699, 0.0
  %702 = vadd.xlane.f32.xlu0 %v700
  %v703 = vpop.xlane.xlu0 %702
  %704 = vadd.xlane.f32.xlu0 %v701
  %v705 = vpop.xlane.xlu0 %704
  %v706 = vlog2.pop %v703
  %v707 = vmul.f32 %v706, 0.6931472
  %v708 = vlog2.pop %v705
  %v709 = vmul.f32 %v708, 0.6931472
  %v710 = vsub.f32 %v694, %v707
  %v711 = vsub.f32 %v695, %v709
  %712 = vst [vmem:[%s8] sm:$0xff] %v710
  %713 = vst [vmem:[%s8 + $0x8] sm:$0xff] %v711
  // Predicated region
  $region34: #{gnn_forward.1} parent=0 // pred_check
    _
  $region35: #{gnn_forward.1} parent=0 // pred_check_branch
    %715 = sbr.rel (0) target = $region37
  $region36: #{gnn_forward.1} parent=0 // pred_region
    _
  $region37: #{gnn_forward.1} parent=0 // pred_fallthru
    _
  // Predicated region
  $region38: #{gnn_forward.1} parent=0 // pred_check
    _
  $region39: #{gnn_forward.1} parent=0 // pred_check_branch
    %717 = sbr.rel (0) target = $region41
  $region40: #{gnn_forward.1} parent=0 // pred_region
    _
  $region41: #{gnn_forward.1} parent=0 // pred_fallthru
    _

</llo_original>
